<compile_context>
chip_gen: v7x
topology: tpu7x:2x2x1
jax: 0.10.0
libtpu: 0.0.40
codegen_flags: <defaults>
</compile_context>

<pallas_src>
import functools

import jax
import jax.numpy as jnp
from jax.experimental import pallas as pl
from jax.experimental.pallas import tpu as pltpu

N_ACTIONS = 2
HIDDEN = 64


def _round_up(x, m):
    return (x + m - 1) // m * m


def _agent_net_kernel(x_ref, w1_ref, b1_ref, w2_ref, b2_ref, w3_ref, b3_ref, o_ref):
    """Fused MLP tile: relu(relu(x@W1+b1)@W2+b2)@W3+b3 for one batch tile."""
    cd = w1_ref.dtype
    x = x_ref[...].astype(cd)                                           # f32 -> bf16 on VPU (in-kernel)
    h1 = jnp.dot(x, w1_ref[...], preferred_element_type=jnp.float32)    # MXU, f32 acc
    h1 = jnp.maximum(h1 + b1_ref[...], 0.0).astype(cd)                  # f32 epilogue (v5e-safe)
    h2 = jnp.dot(h1, w2_ref[...], preferred_element_type=jnp.float32)
    h2 = jnp.maximum(h2 + b2_ref[...], 0.0).astype(cd)
    out = jnp.dot(h2, w3_ref[...], preferred_element_type=jnp.float32)  # (tile, n_actions)
    o_ref[...] = out + b3_ref[...]                                      # narrow store, masked vst is cheap


@functools.partial(jax.jit, static_argnames=("tile_b", "compute_dtype"))
def agent_net_forward(x, params, *, tile_b=2048, compute_dtype=jnp.bfloat16):
    """x: (B, input_dim) float32. params: dict of w1,b1,w2,b2,w3,b3.

    Returns (B, n_actions) float32, matching the PyTorch AgentNet forward up to
    bf16 quantization of the MXU operands (set compute_dtype=jnp.float32 for a
    bit-closer match).
    """
    B, D = x.shape
    n_out = params["w3"].shape[1]

    # MXU operands in compute dtype; biases / epilogues stay f32.
    w1 = params["w1"].astype(compute_dtype)      # (D, 64)
    w2 = params["w2"].astype(compute_dtype)      # (64, 64)
    w3 = params["w3"].astype(compute_dtype)      # (64, n_out)
    b1 = params["b1"].astype(jnp.float32)        # (1, 64)
    b2 = params["b2"].astype(jnp.float32)        # (1, 64)
    b3 = params["b3"].astype(jnp.float32)        # (1, n_out)

    # Batch tiling: no padding of B; partial last block handled by Pallas
    # (OOB reads give garbage rows whose output writes are masked).
    if B <= tile_b:
        tile = B                                 # block == full array -> always legal
    else:
        # >= 2 steps and an even step count so v7x megacore splits evenly.
        n_steps = 2 * pl.cdiv(B, 2 * tile_b)
        tile = _round_up(pl.cdiv(B, n_steps), 8)
    grid = (pl.cdiv(B, tile),)

    # Constant index_map -> operand stays VMEM-resident across grid steps.
    const2d = lambda a: pl.BlockSpec(a.shape, lambda i: (0, 0))

    out = pl.pallas_call(
        _agent_net_kernel,
        out_shape=jax.ShapeDtypeStruct((B, n_out), jnp.float32),
        grid=grid,
        in_specs=[
            pl.BlockSpec((tile, D), lambda i: (i, 0)),   # x: pipelined over batch tiles, native f32
            const2d(w1), const2d(b1),
            const2d(w2), const2d(b2),
            const2d(w3), const2d(b3),
        ],
        out_specs=pl.BlockSpec((tile, n_out), lambda i: (i, 0)),
        compiler_params=pltpu.CompilerParams(
            dimension_semantics=("parallel",),           # megacore-shardable on v7x
            vmem_limit_bytes=32 * 1024 * 1024,           # footprint is a few MiB; safe on v5e/v6e/v7x
        ),
    )(x, w1, b1, w2, b2, w3, b3)

    return out


def init_params(key, input_dim, n_actions=N_ACTIONS, hidden=HIDDEN):
    """Deterministic synthetic params (torch Linear-style uniform init)."""
    ks = jax.random.split(key, 6)

    def linear(kw, kb, fan_in, fan_out):
        bound = 1.0 / jnp.sqrt(jnp.float32(fan_in))
        w = jax.random.uniform(kw, (fan_in, fan_out), jnp.float32, -bound, bound)
        b = jax.random.uniform(kb, (1, fan_out), jnp.float32, -bound, bound)
        return w, b

    w1, b1 = linear(ks[0], ks[1], input_dim, hidden)
    w2, b2 = linear(ks[2], ks[3], hidden, hidden)
    w3, b3 = linear(ks[4], ks[5], hidden, n_actions)
    return {"w1": w1, "b1": b1, "w2": w2, "b2": b2, "w3": w3, "b3": b3}


def _reference_forward_matched(x, p, compute_dtype=jnp.bfloat16):
    """JAX reference with the same operand dtypes as the kernel (tight check)."""
    cd = compute_dtype
    h1 = jnp.maximum(
        jnp.dot(x.astype(cd), p["w1"].astype(cd), preferred_element_type=jnp.float32)
        + p["b1"], 0.0)
    h2 = jnp.maximum(
        jnp.dot(h1.astype(cd), p["w2"].astype(cd), preferred_element_type=jnp.float32)
        + p["b2"], 0.0)
    return (jnp.dot(h2.astype(cd), p["w3"].astype(cd), preferred_element_type=jnp.float32)
            + p["b3"])


def _reference_forward_f32(x, p):
    """Pure f32 reference (loose sanity check on bf16 operand quantization)."""
    h1 = jnp.maximum(x @ p["w1"] + p["b1"], 0.0)
    h2 = jnp.maximum(h1 @ p["w2"] + p["b2"], 0.0)
    return h2 @ p["w3"] + p["b3"]


if __name__ == "__main__":
    key = jax.random.PRNGKey(0)
    k_x, k_p, k_big = jax.random.split(key, 3)

    batch = 2
    input_dim = 4  # small observation vector, consistent with a VDN agent
    params = init_params(k_p, input_dim, N_ACTIONS)

    # Small-shape check (single grid step, block == full array, no padding).
    x = jax.random.normal(k_x, (batch, input_dim), jnp.float32)
    out = jax.block_until_ready(agent_net_forward(x, params))
    assert out.shape == (batch, N_ACTIONS)
    ref = _reference_forward_matched(x, params)
    assert jnp.allclose(out, ref, atol=1e-4, rtol=1e-4), "mismatch vs. matched reference"
    ref32 = _reference_forward_f32(x, params)
    assert jnp.allclose(out, ref32, atol=1e-1, rtol=1e-1), "mismatch vs. f32 reference"

    # Larger, non-multiple batch exercises the multi-step grid with an even
    # step count and a partial (masked) last block.
    x_big = jax.random.normal(k_big, (1537, input_dim), jnp.float32)
    out_big = jax.block_until_ready(agent_net_forward(x_big, params, tile_b=512))
    ref_big = _reference_forward_matched(x_big, params)
    assert out_big.shape == (1537, N_ACTIONS)
    assert jnp.allclose(out_big, ref_big, atol=1e-4, rtol=1e-4), "mismatch (large batch)"

    print("KERNEL_OK")
</pallas_src>

<mosaic_0001>
module attributes {stable_mosaic.version = 11 : i64} {
  func.func @_agent_net_kernel(%arg0: i32, %arg1: memref<2x4xf32, #tpu.memory_space<vmem>>, %arg2: memref<4x64xbf16, #tpu.memory_space<vmem>>, %arg3: memref<1x64xf32, #tpu.memory_space<vmem>>, %arg4: memref<64x64xbf16, #tpu.memory_space<vmem>>, %arg5: memref<1x64xf32, #tpu.memory_space<vmem>>, %arg6: memref<64x2xbf16, #tpu.memory_space<vmem>>, %arg7: memref<1x2xf32, #tpu.memory_space<vmem>>, %arg8: memref<2x2xf32, #tpu.memory_space<vmem>>) attributes {dimension_semantics = [#tpu.dimension_semantics<parallel>], iteration_bounds = array<i64: 1>, scalar_prefetch = 0 : i64, scratch_operands = 0 : i64, tpu.core_type = #tpu.core_type<tc>, window_params = [{transform_indices = @transform_0, window_bounds = array<i64: 2, 4>}, {pipeline_mode = #tpu.pipeline_mode<synchronous>, transform_indices = @transform_1, window_bounds = array<i64: 4, 64>}, {pipeline_mode = #tpu.pipeline_mode<synchronous>, transform_indices = @transform_2, window_bounds = array<i64: 1, 64>}, {pipeline_mode = #tpu.pipeline_mode<synchronous>, transform_indices = @transform_3, window_bounds = array<i64: 64, 64>}, {pipeline_mode = #tpu.pipeline_mode<synchronous>, transform_indices = @transform_4, window_bounds = array<i64: 1, 64>}, {pipeline_mode = #tpu.pipeline_mode<synchronous>, transform_indices = @transform_5, window_bounds = array<i64: 64, 2>}, {pipeline_mode = #tpu.pipeline_mode<synchronous>, transform_indices = @transform_6, window_bounds = array<i64: 1, 2>}, {transform_indices = @transform_7, window_bounds = array<i64: 2, 2>}]} {
    %c0 = arith.constant 0 : index
    %c0_0 = arith.constant 0 : index
    %0 = vector.load %arg1[%c0, %c0_0] : memref<2x4xf32, #tpu.memory_space<vmem>>, vector<2x4xf32>
    %1 = arith.truncf %0 : vector<2x4xf32> to vector<2x4xbf16>
    %c0_1 = arith.constant 0 : index
    %c0_2 = arith.constant 0 : index
    %2 = vector.load %arg2[%c0_1, %c0_2] : memref<4x64xbf16, #tpu.memory_space<vmem>>, vector<4x64xbf16>
    %cst = arith.constant dense<0.000000e+00> : vector<2x64xf32>
    %3 = tpu.matmul %1, %2, %cst {dimension_numbers = #tpu.dot_dimension_numbers<[1], [0], [0], [1], [0, 0, 1, 1], [], []>} : vector<2x4xbf16>, vector<4x64xbf16>, vector<2x64xf32> -> vector<2x64xf32>
    %c0_3 = arith.constant 0 : index
    %c0_4 = arith.constant 0 : index
    %4 = vector.load %arg3[%c0_3, %c0_4] : memref<1x64xf32, #tpu.memory_space<vmem>>, vector<1x64xf32>
    %5 = vector.broadcast %4 : vector<1x64xf32> to vector<2x64xf32>
    %6 = arith.addf %3, %5 : vector<2x64xf32>
    %cst_5 = arith.constant 0.000000e+00 : f32
    %7 = vector.broadcast %cst_5 : f32 to vector<2x64xf32>
    %8 = arith.maximumf %6, %7 : vector<2x64xf32>
    %9 = arith.truncf %8 : vector<2x64xf32> to vector<2x64xbf16>
    %c0_6 = arith.constant 0 : index
    %c0_7 = arith.constant 0 : index
    %10 = vector.load %arg4[%c0_6, %c0_7] : memref<64x64xbf16, #tpu.memory_space<vmem>>, vector<64x64xbf16>
    %cst_8 = arith.constant dense<0.000000e+00> : vector<2x64xf32>
    %11 = tpu.matmul %9, %10, %cst_8 {dimension_numbers = #tpu.dot_dimension_numbers<[1], [0], [0], [1], [0, 0, 1, 1], [], []>} : vector<2x64xbf16>, vector<64x64xbf16>, vector<2x64xf32> -> vector<2x64xf32>
    %c0_9 = arith.constant 0 : index
    %c0_10 = arith.constant 0 : index
    %12 = vector.load %arg5[%c0_9, %c0_10] : memref<1x64xf32, #tpu.memory_space<vmem>>, vector<1x64xf32>
    %13 = vector.broadcast %12 : vector<1x64xf32> to vector<2x64xf32>
    %14 = arith.addf %11, %13 : vector<2x64xf32>
    %cst_11 = arith.constant 0.000000e+00 : f32
    %15 = vector.broadcast %cst_11 : f32 to vector<2x64xf32>
    %16 = arith.maximumf %14, %15 : vector<2x64xf32>
    %17 = arith.truncf %16 : vector<2x64xf32> to vector<2x64xbf16>
    %c0_12 = arith.constant 0 : index
    %c0_13 = arith.constant 0 : index
    %18 = vector.load %arg6[%c0_12, %c0_13] : memref<64x2xbf16, #tpu.memory_space<vmem>>, vector<64x2xbf16>
    %cst_14 = arith.constant dense<0.000000e+00> : vector<2x2xf32>
    %19 = tpu.matmul %17, %18, %cst_14 {dimension_numbers = #tpu.dot_dimension_numbers<[1], [0], [0], [1], [0, 0, 1, 1], [], []>} : vector<2x64xbf16>, vector<64x2xbf16>, vector<2x2xf32> -> vector<2x2xf32>
    %c0_15 = arith.constant 0 : index
    %c0_16 = arith.constant 0 : index
    %20 = vector.load %arg7[%c0_15, %c0_16] : memref<1x2xf32, #tpu.memory_space<vmem>>, vector<1x2xf32>
    %21 = vector.broadcast %20 : vector<1x2xf32> to vector<2x2xf32>
    %22 = arith.addf %19, %21 : vector<2x2xf32>
    %c0_17 = arith.constant 0 : index
    %c0_18 = arith.constant 0 : index
    %23 = vector.load %arg8[%c0_17, %c0_18] : memref<2x2xf32, #tpu.memory_space<vmem>>, vector<2x2xf32>
    tpu.vector_store %arg8[%c0_17, %c0_18], %22 {strides = array<i32>} : memref<2x2xf32, #tpu.memory_space<vmem>>, vector<2x2xf32>,
    return
  }
  func.func @transform_0(%arg0: i32) -> (i32, i32) {
    %c0_i32 = arith.constant 0 : i32
    %c0_i32_0 = arith.constant 0 : i32
    return %arg0, %c0_i32 : i32, i32
  }
  func.func @transform_1(%arg0: i32) -> (i32, i32) {
    %c0_i32 = arith.constant 0 : i32
    %c0_i32_0 = arith.constant 0 : i32
    %c0_i32_1 = arith.constant 0 : i32
    return %c0_i32, %c0_i32_0 : i32, i32
  }
  func.func @transform_2(%arg0: i32) -> (i32, i32) {
    %c0_i32 = arith.constant 0 : i32
    %c0_i32_0 = arith.constant 0 : i32
    %c0_i32_1 = arith.constant 0 : i32
    return %c0_i32, %c0_i32_0 : i32, i32
  }
  func.func @transform_3(%arg0: i32) -> (i32, i32) {
    %c0_i32 = arith.constant 0 : i32
    %c0_i32_0 = arith.constant 0 : i32
    %c0_i32_1 = arith.constant 0 : i32
    return %c0_i32, %c0_i32_0 : i32, i32
  }
  func.func @transform_4(%arg0: i32) -> (i32, i32) {
    %c0_i32 = arith.constant 0 : i32
    %c0_i32_0 = arith.constant 0 : i32
    %c0_i32_1 = arith.constant 0 : i32
    return %c0_i32, %c0_i32_0 : i32, i32
  }
  func.func @transform_5(%arg0: i32) -> (i32, i32) {
    %c0_i32 = arith.constant 0 : i32
    %c0_i32_0 = arith.constant 0 : i32
    %c0_i32_1 = arith.constant 0 : i32
    return %c0_i32, %c0_i32_0 : i32, i32
  }
  func.func @transform_6(%arg0: i32) -> (i32, i32) {
    %c0_i32 = arith.constant 0 : i32
    %c0_i32_0 = arith.constant 0 : i32
    %c0_i32_1 = arith.constant 0 : i32
    return %c0_i32, %c0_i32_0 : i32, i32
  }
  func.func @transform_7(%arg0: i32) -> (i32, i32) {
    %c0_i32 = arith.constant 0 : i32
    %c0_i32_0 = arith.constant 0 : i32
    return %arg0, %c0_i32 : i32, i32
  }
}

</mosaic_0001>

<llo_original>
// kernel: agent_net_forward.1
$region0: #{agent_net_forward.1}
  #allocation0 [shape = 'u32[]', space=smem, size = 0x4, offset = 0x4, fixed_abs, tag = 'smem constant byte address 0x4 - core index']
  #allocation1 [shape = 'u32[144,128]{1,0:T(1,128)}', space=vmem, size = 0x12000, scoped, tag = 'internal scratch']
  %s0 = inlined_call_operand.vmem [shape: f32[2,4], index: 0, kind: input, shape index: {}]
  %s1 = inlined_call_operand.vmem [shape: bf16[4,64], index: 1, kind: input, shape index: {}]
  %s2 = inlined_call_operand.vmem [shape: f32[1,64], index: 2, kind: input, shape index: {}]
  %s3 = inlined_call_operand.vmem [shape: bf16[64,64], index: 3, kind: input, shape index: {}]
  %s4 = inlined_call_operand.vmem [shape: f32[1,64], index: 4, kind: input, shape index: {}]
  %s5 = inlined_call_operand.vmem [shape: bf16[64,2], index: 5, kind: input, shape index: {}]
  %s6 = inlined_call_operand.vmem [shape: f32[1,2], index: 6, kind: input, shape index: {}]
  %s7 = inlined_call_operand.hbm [shape: f32[2,2], index: 7, kind: output, shape index: {}]
  %s8 = sld [smem:[#allocation0]]
  $region38: #{agent_net_forward.1} parent=0
    _
  %s10 = ssub.s32 1, %s8
  %s11 = scalar_select 0, %s10, %s8
  $region1: #{agent_net_forward.1} parent=0
    #allocation2 [shape = 'u8[1024]{0}', space=vmem, size = 0x400, scoped, tag = 'output window, operand 0, single buffered']
    #allocation3 [shape = 's32[1]{0}', space=sflag, size = 0x4, scoped, tag = 'scoped memory for agent_net_forward.1']
    %12 = vsyncpa [#allocation3], 0
    // Predicated region
    $region2: #{agent_net_forward.1} parent=1 // pred_check
      _
    $region3: #{agent_net_forward.1} parent=1 // pred_check_branch
      %14 = sbr.rel (0) target = $region5
    $region4: #{agent_net_forward.1} parent=1 // pred_region
      _
    $region5: #{agent_net_forward.1} parent=1 // pred_fallthru
      _
    // Predicated region
    $region6: #{agent_net_forward.1} parent=1 // pred_check
      _
    $region7: #{agent_net_forward.1} parent=1 // pred_check_branch
      %16 = sbr.rel (0) target = $region9
    $region8: #{agent_net_forward.1} parent=1 // pred_region
      _
    $region9: #{agent_net_forward.1} parent=1 // pred_fallthru
      _
    // Predicated region
    $region10: #{agent_net_forward.1} parent=1 // pred_check
      _
    $region11: #{agent_net_forward.1} parent=1 // pred_check_branch
      %18 = sbr.rel (0) target = $region13
    $region12: #{agent_net_forward.1} parent=1 // pred_region
      _
    $region13: #{agent_net_forward.1} parent=1 // pred_fallthru
      _
    // Predicated region
    $region14: #{agent_net_forward.1} parent=1 // pred_check
      _
    $region15: #{agent_net_forward.1} parent=1 // pred_check_branch
      %20 = sbr.rel (0) target = $region17
    $region16: #{agent_net_forward.1} parent=1 // pred_region
      _
    $region17: #{agent_net_forward.1} parent=1 // pred_fallthru
      _
    // Predicated region
    $region18: #{agent_net_forward.1} parent=1 // pred_check
      _
    $region19: #{agent_net_forward.1} parent=1 // pred_check_branch
      %22 = sbr.rel (0) target = $region21
    $region20: #{agent_net_forward.1} parent=1 // pred_region
      _
    $region21: #{agent_net_forward.1} parent=1 // pred_fallthru
      _
    // Predicated region
    $region22: #{agent_net_forward.1} parent=1 // pred_check
      _
    $region23: #{agent_net_forward.1} parent=1 // pred_check_branch
      %24 = sbr.rel (0) target = $region25
    $region24: #{agent_net_forward.1} parent=1 // pred_region
      _
    $region25: #{agent_net_forward.1} parent=1 // pred_fallthru
      _
    // Predicated region
    $region26: #{agent_net_forward.1} parent=1 // pred_check
      _
    $region27: #{agent_net_forward.1} parent=1 // pred_check_branch
      %26 = sbr.rel (0) target = $region29
    $region28: #{agent_net_forward.1} parent=1 // pred_region
      _
    $region29: #{agent_net_forward.1} parent=1 // pred_fallthru
      _
    %v28 = vld [vmem:[%s0] sm:$0x3]
    %v29 = vpack.c.bf16 %v28, %v28
    %v30 = vld [vmem:[%s1] sm:$0x3]
    %v31 = vld [vmem:[%s2] sm:$0x1]
    %v33 = vlaneseq
    %v34 = vshrl.u32 %v33, 7
    %v35 = vsub.s32 0, %v34
    %v36 = vrot.slane %v31, %v35
    %vm38 = vcmask 31744
    %v40 = vsel %vm38, %v29, 0
    %vm42 = vcmask 1041408
    %v44 = vsel %vm42, %v30, 0
    %46 = vmatprep.subr.bf16.mxu0 0
    %47 = vmatpush1.bf16.msra.mxu0 %v44
    %48 = vmatprep.subr.bf16.mxu0 0
    %49 = vmatpush1.bf16.msra.mxu0 0
    %50 = vmatprep.subr.bf16.mxu0 0
    %51 = vmatpush1.bf16.msra.mxu0 0
    %52 = vmatprep.subr.bf16.mxu0 0
    %53 = vmatpush1.bf16.msra.mxu0 0
    %54 = vmatprep.subr.bf16.mxu0 0
    %55 = vmatpush1.bf16.msra.mxu0 0
    %56 = vmatprep.subr.bf16.mxu0 0
    %57 = vmatpush1.bf16.msra.mxu0 0
    %58 = vmatprep.subr.bf16.mxu0 0
    %59 = vmatpush1.bf16.msra.mxu0 0
    %60 = vmatprep.subr.bf16.mxu0 0
    %61 = vmatpush1.bf16.msra.mxu0 0
    %62 = vmatprep.subr.bf16.mxu0 0
    %63 = vmatpush1.bf16.msra.mxu0 0
    %64 = vmatprep.subr.bf16.mxu0 0
    %65 = vmatpush1.bf16.msra.mxu0 0
    %66 = vmatprep.subr.bf16.mxu0 0
    %67 = vmatpush1.bf16.msra.mxu0 0
    %68 = vmatprep.subr.bf16.mxu0 0
    %69 = vmatpush1.bf16.msra.mxu0 0
    %70 = vmatprep.subr.bf16.mxu0 0
    %71 = vmatpush1.bf16.msra.mxu0 0
    %72 = vmatprep.subr.bf16.mxu0 0
    %73 = vmatpush1.bf16.msra.mxu0 0
    %74 = vmatprep.subr.bf16.mxu0 0
    %75 = vmatpush1.bf16.msra.mxu0 0
    %76 = vmatprep.subr.bf16.mxu0 0
    %77 = vmatpush1.bf16.msra.mxu0 0
    %78 = vmatprep.mubr.bf16.mxu0 0
    %79 = vmatmul.mubr.bf16.gmra.mrb[0].mxu0 %v40
    %v80 = vpop.f32.mrb[0].mxu0
    %v81 = vadd.f32 %v36, %v80
    %v82 = vpop.f32.mrb[0].mxu0
    %v83 = vpop.f32.mrb[0].mxu0
    %v84 = vpop.f32.mrb[0].mxu0
    %85 = vdwg.mxu0
    %v86 = vmax.f32 %v81, 0.0
    %v87 = vpack.c.bf16 %v86, %v86
    %v88 = vld [vmem:[%s3] sm:$0xf]
    %v89 = vld [vmem:[%s3 + $0x4] sm:$0xf]
    %v90 = vld [vmem:[%s3 + $0x8] sm:$0xf]
    %v91 = vld [vmem:[%s3 + $0xc] sm:$0xf]
    %v92 = vld [vmem:[%s3 + $0x10] sm:$0xf]
    %v93 = vld [vmem:[%s3 + $0x14] sm:$0xf]
    %v94 = vld [vmem:[%s3 + $0x18] sm:$0xf]
    %v95 = vld [vmem:[%s3 + $0x1c] sm:$0xf]
    %v96 = vld [vmem:[%s4] sm:$0x1]
    %v98 = vlaneseq
    %v99 = vshrl.u32 %v98, 7
    %v100 = vsub.s32 0, %v99
    %v101 = vrot.slane %v96, %v100
    %v111 = vunpack.c.l.b16 %v88
    %v112 = vunpack.c.l.b16 %v89
    %v113 = vunpack.c.l.b16 %v90
    %v114 = vunpack.c.l.b16 %v91
    %v115 = vunpack.c.l.b16 %v92
    %v116 = vunpack.c.l.b16 %v93
    %v117 = vunpack.c.l.b16 %v94
    %v118 = vunpack.c.l.b16 %v95
    %v119 = vpack.c.b16 %v112, %v111
    %v120 = vpack.c.b16 %v114, %v113
    %v121 = vpack.c.b16 %v116, %v115
    %v122 = vpack.c.b16 %v118, %v117
    %vm127 = vcmask 523264
    %v129 = vsel %vm127, %v87, 0
    %131 = vmatprep.subr.bf16.mxu0 0
    %132 = vmatpush1.bf16.msra.mxu0 %v119
    %133 = vmatprep.subr.bf16.mxu0 0
    %134 = vmatpush1.bf16.msra.mxu0 %v120
    %135 = vmatprep.subr.bf16.mxu0 0
    %136 = vmatpush1.bf16.msra.mxu0 %v121
    %137 = vmatprep.subr.bf16.mxu0 0
    %138 = vmatpush1.bf16.msra.mxu0 %v122
    %139 = vmatprep.subr.bf16.mxu0 0
    %140 = vmatpush1.bf16.msra.mxu0 0
    %141 = vmatprep.subr.bf16.mxu0 0
    %142 = vmatpush1.bf16.msra.mxu0 0
    %143 = vmatprep.subr.bf16.mxu0 0
    %144 = vmatpush1.bf16.msra.mxu0 0
    %145 = vmatprep.subr.bf16.mxu0 0
    %146 = vmatpush1.bf16.msra.mxu0 0
    %147 = vmatprep.subr.bf16.mxu0 0
    %148 = vmatpush1.bf16.msra.mxu0 0
    %149 = vmatprep.subr.bf16.mxu0 0
    %150 = vmatpush1.bf16.msra.mxu0 0
    %151 = vmatprep.subr.bf16.mxu0 0
    %152 = vmatpush1.bf16.msra.mxu0 0
    %153 = vmatprep.subr.bf16.mxu0 0
    %154 = vmatpush1.bf16.msra.mxu0 0
    %155 = vmatprep.subr.bf16.mxu0 0
    %156 = vmatpush1.bf16.msra.mxu0 0
    %157 = vmatprep.subr.bf16.mxu0 0
    %158 = vmatpush1.bf16.msra.mxu0 0
    %159 = vmatprep.subr.bf16.mxu0 0
    %160 = vmatpush1.bf16.msra.mxu0 0
    %161 = vmatprep.subr.bf16.mxu0 0
    %162 = vmatpush1.bf16.msra.mxu0 0
    %163 = vmatprep.mubr.bf16.mxu0 0
    %164 = vmatmul.mubr.bf16.gmra.mrb[0].mxu0 %v129
    %v165 = vpop.f32.mrb[0].mxu0
    %v166 = vadd.f32 %v101, %v165
    %v167 = vpop.f32.mrb[0].mxu0
    %v168 = vpop.f32.mrb[0].mxu0
    %v169 = vpop.f32.mrb[0].mxu0
    %170 = vdwg.mxu0
    %v171 = vmax.f32 %v166, 0.0
    %v172 = vpack.c.bf16 %v171, %v171
    %v173 = vld [vmem:[%s5] sm:$0xf]
    %v174 = vld [vmem:[%s5 + $0x4] sm:$0xf]
    %v175 = vld [vmem:[%s5 + $0x8] sm:$0xf]
    %v176 = vld [vmem:[%s5 + $0xc] sm:$0xf]
    %v177 = vld [vmem:[%s5 + $0x10] sm:$0xf]
    %v178 = vld [vmem:[%s5 + $0x14] sm:$0xf]
    %v179 = vld [vmem:[%s5 + $0x18] sm:$0xf]
    %v180 = vld [vmem:[%s5 + $0x1c] sm:$0xf]
    %v181 = vld [vmem:[%s6] sm:$0x1]
    %v183 = vlaneseq
    %v184 = vshrl.u32 %v183, 7
    %v185 = vsub.s32 0, %v184
    %v186 = vrot.slane %v181, %v185
    %v196 = vunpack.c.l.b16 %v173
    %v197 = vunpack.c.l.b16 %v174
    %v198 = vunpack.c.l.b16 %v175
    %v199 = vunpack.c.l.b16 %v176
    %v200 = vunpack.c.l.b16 %v177
    %v201 = vunpack.c.l.b16 %v178
    %v202 = vunpack.c.l.b16 %v179
    %v203 = vunpack.c.l.b16 %v180
    %v204 = vpack.c.b16 %v197, %v196
    %v205 = vpack.c.b16 %v199, %v198
    %v206 = vpack.c.b16 %v201, %v200
    %v207 = vpack.c.b16 %v203, %v202
    %v213 = vsel %vm127, %v172, 0
    %215 = vmatprep.subr.bf16.mxu0 0
    %216 = vmatpush1.bf16.msra.mxu0 %v204
    %217 = vmatprep.subr.bf16.mxu0 0
    %218 = vmatpush1.bf16.msra.mxu0 %v205
    %219 = vmatprep.subr.bf16.mxu0 0
    %220 = vmatpush1.bf16.msra.mxu0 %v206
    %221 = vmatprep.subr.bf16.mxu0 0
    %222 = vmatpush1.bf16.msra.mxu0 %v207
    %223 = vmatprep.subr.bf16.mxu0 0
    %224 = vmatpush1.bf16.msra.mxu0 0
    %225 = vmatprep.subr.bf16.mxu0 0
    %226 = vmatpush1.bf16.msra.mxu0 0
    %227 = vmatprep.subr.bf16.mxu0 0
    %228 = vmatpush1.bf16.msra.mxu0 0
    %229 = vmatprep.subr.bf16.mxu0 0
    %230 = vmatpush1.bf16.msra.mxu0 0
    %231 = vmatprep.subr.bf16.mxu0 0
    %232 = vmatpush1.bf16.msra.mxu0 0
    %233 = vmatprep.subr.bf16.mxu0 0
    %234 = vmatpush1.bf16.msra.mxu0 0
    %235 = vmatprep.subr.bf16.mxu0 0
    %236 = vmatpush1.bf16.msra.mxu0 0
    %237 = vmatprep.subr.bf16.mxu0 0
    %238 = vmatpush1.bf16.msra.mxu0 0
    %239 = vmatprep.subr.bf16.mxu0 0
    %240 = vmatpush1.bf16.msra.mxu0 0
    %241 = vmatprep.subr.bf16.mxu0 0
    %242 = vmatpush1.bf16.msra.mxu0 0
    %243 = vmatprep.subr.bf16.mxu0 0
    %244 = vmatpush1.bf16.msra.mxu0 0
    %245 = vmatprep.subr.bf16.mxu0 0
    %246 = vmatpush1.bf16.msra.mxu0 0
    %247 = vmatprep.mubr.bf16.mxu0 0
    %248 = vmatmul.mubr.bf16.gmra.mrb[0].mxu0 %v213
    %v249 = vpop.f32.mrb[0].mxu0
    %v250 = vadd.f32 %v186, %v249
    %v251 = vpop.f32.mrb[0].mxu0
    %v252 = vpop.f32.mrb[0].mxu0
    %v253 = vpop.f32.mrb[0].mxu0
    %254 = vdwg.mxu0
    %vm255 = vcmask 9216
    %256 = vst.msk [vmem:[#allocation2] sm:$0x3] %vm255, %v250
    // Predicated region
    $region30: #{agent_net_forward.1} parent=1 // pred_check
      _
    $region31: #{agent_net_forward.1} parent=1 // pred_check_branch
      %258 = sbr.rel (0) target = $region33
    $region32: #{agent_net_forward.1} parent=1 // pred_region
      %s260 = ssub.s32 32, 32
      %261 = vsyncadd [#allocation3], %s260
      %s263 = sshll.u32 [#allocation2], 4
      %s264 = int_to_ptr.vmem [resolvable:$true] %s263
      %266 = dma.vmem_to_hbm [thread:$0]  %s264, 32, %s7, [#allocation3]
    $region33: #{agent_net_forward.1} parent=1 // pred_fallthru
      _
    // Predicated region
    $region34: #{agent_net_forward.1} parent=1 // pred_check
      _
    $region35: #{agent_net_forward.1} parent=1 // pred_check_branch
      %268 = sbr.rel (0) target = $region37
    $region36: #{agent_net_forward.1} parent=1 // pred_region
      %269 = dma.done [#allocation3], 32
    $region37: #{agent_net_forward.1} parent=1 // pred_fallthru
      _
    %270 = vsyncpa [#allocation3], 1

</llo_original>
